<compile_context>
chip_gen: v7x
topology: tpu7x:2x2x1
jax: 0.10.0
libtpu: 0.0.40
codegen_flags: <defaults>
</compile_context>

<pallas_src>
import jax
import jax.numpy as jnp
from jax import lax
from jax.experimental import pallas as pl
from jax.experimental.pallas import tpu as pltpu

# Module constants (from bigram_v2.py)
BLOCK_SIZE = 64      # max sequence length
N_EMBD = 384         # n_embd_dim
HEAD_SIZE = 64       # head_size for the example
DROPOUT_P = 0.2      # TODO(synk): dropout implemented in eval mode (identity);
                     # training-mode stochastic dropout omitted for determinism.

# Plain Python float -> inlined literal inside the kernel (no captured jnp const).
_NEG_BIG = -1e30     # finite "-inf"; masked logits underflow to exactly 0 after exp.


def _head_kernel(x_ref, wqkv_ref, o_ref):
    # x_ref block: (Bb, T, C) f32; wqkv block: (C, 3H) bf16; out block: (Bb, T, H) f32
    Bb, T, C = x_ref.shape
    H = o_ref.shape[-1]

    # Cast to bf16 in-kernel (cheap VPU work hidden under the projection matmul;
    # avoids a separate wrapper-side HBM pass over x).
    x2d = x_ref[...].astype(jnp.bfloat16).reshape(Bb * T, C)

    # ---- fused QKV projection: batch folded into M -> one (Bb*T, C) @ (C, 3H) ----
    qkv = jnp.dot(x2d, wqkv_ref[...],
                  preferred_element_type=jnp.float32)          # (Bb*T, 3H) f32
    qkv = qkv.reshape(Bb, T, 3 * H)
    # The C**-0.5 score scale is pre-folded into the w_query columns of wqkv.
    q = qkv[:, :, 0 * H:1 * H].astype(jnp.bfloat16)            # (Bb, T, H)
    k = qkv[:, :, 1 * H:2 * H].astype(jnp.bfloat16)
    v = qkv[:, :, 2 * H:3 * H].astype(jnp.bfloat16)

    # ---- scores: batched q @ k^T without explicit transpose ----
    wei = lax.dot_general(
        q, k,
        dimension_numbers=(((2,), (2,)), ((0,), (0,))),
        preferred_element_type=jnp.float32)                    # (Bb, T, T) f32

    # ---- causal mask (batch-invariant (T, T), broadcast against scores) ----
    row = lax.broadcasted_iota(jnp.int32, (T, T), 0)
    col = lax.broadcasted_iota(jnp.int32, (T, T), 1)
    wei = jnp.where(col <= row, wei, _NEG_BIG)

    # ---- numerically stable softmax (f32), EUP reciprocal ----
    m = jnp.max(wei, axis=-1, keepdims=True)
    e = jnp.exp(wei - m)
    s = jnp.sum(e, axis=-1, keepdims=True)
    p = e * pl.reciprocal(s, approx=True)

    # Dropout (eval mode -> identity)

    # ---- out = wei @ v (bf16 in, f32 acc) ----
    out = lax.dot_general(
        p.astype(jnp.bfloat16), v,
        dimension_numbers=(((2,), (1,)), ((0,), (0,))),
        preferred_element_type=jnp.float32)                    # (Bb, T, H)

    # TODO(synk): single-head H=64 output (<128 lanes) incurs masked stores; the
    # structural fix is multi-head fusion (natural last dim >= 128). A lane-
    # flattened (B, T*H) output needs a cross-lane repack that must be verified
    # on a bundle dump before adopting, so it is not taken here.
    o_ref[...] = out.astype(o_ref.dtype)


def head_forward(x, w_key, w_query, w_value, *, block_b=None):
    """x: (B, T, C) f32; w_*: (C, H) f32 (nn.Linear(C, H, bias=False) as x @ W).
    Returns (B, T, H) f32."""
    B, T, C = x.shape
    H = w_key.shape[1]

    # Fuse QKV weights -> (C, 3H), order [q | k | v]; fold the C**-0.5 score
    # scale into the query columns; bf16 for full-rate MXU.
    scale = float(C) ** -0.5
    w_qkv = jnp.concatenate([w_query * scale, w_key, w_value],
                            axis=1).astype(jnp.bfloat16)

    if block_b is None:
        # Target ~2048 rows (= block_b*T) of fused-projection M per grid step so
        # per-step MXU work dwarfs the ~0.35us fixed step overhead.  No ">=2
        # steps" clamp: single-TC chips gain nothing from extra steps, and on
        # v7x two tiny steps lose to one step at this problem size.
        rows_target = 2048
        block_b = max(1, min(rows_target // T, B))
        while B % block_b != 0:
            block_b -= 1
    grid_b = B // block_b

    flops = 2 * B * T * C * (3 * H) + 4 * B * T * T * H
    bytes_accessed = B * T * C * 4 + C * 3 * H * 2 + B * T * H * 4
    transcendentals = B * T * T

    return pl.pallas_call(
        _head_kernel,
        out_shape=jax.ShapeDtypeStruct((B, T, H), jnp.float32),
        grid_spec=pltpu.PrefetchScalarGridSpec(
            num_scalar_prefetch=0,
            grid=(grid_b,),
            in_specs=[
                pl.BlockSpec((block_b, T, C), lambda b: (b, 0, 0)),
                pl.BlockSpec((C, 3 * H), lambda b: (0, 0)),
            ],
            out_specs=pl.BlockSpec((block_b, T, H), lambda b: (b, 0, 0)),
        ),
        compiler_params=pltpu.CompilerParams(
            dimension_semantics=("parallel",),
        ),
        cost_estimate=pl.CostEstimate(
            flops=flops,
            transcendentals=transcendentals,
            bytes_accessed=bytes_accessed,
        ),
    )(x, w_qkv)


def head_reference(x, w_key, w_query, w_value):
    """Pure-JAX f32 reference mirroring the PyTorch forward (eval mode)."""
    B, T, C = x.shape
    k = x @ w_key
    q = x @ w_query
    v = x @ w_value
    wei = (q @ jnp.swapaxes(k, -2, -1)) * (C ** -0.5)
    tril = jnp.tril(jnp.ones((T, T), jnp.float32))
    wei = jnp.where(tril == 0, -jnp.inf, wei)
    wei = jax.nn.softmax(wei, axis=-1)
    return wei @ v


if __name__ == "__main__":
    key = jax.random.PRNGKey(0)
    k_x, k_wk, k_wq, k_wv = jax.random.split(key, 4)

    B, T, C, H = 2, BLOCK_SIZE, N_EMBD, HEAD_SIZE

    x = jax.random.normal(k_x, (B, T, C), dtype=jnp.float32)
    w_scale = 1.0 / (C ** 0.5)
    w_key_p = jax.random.normal(k_wk, (C, H), dtype=jnp.float32) * w_scale
    w_query_p = jax.random.normal(k_wq, (C, H), dtype=jnp.float32) * w_scale
    w_value_p = jax.random.normal(k_wv, (C, H), dtype=jnp.float32) * w_scale

    out = head_forward(x, w_key_p, w_query_p, w_value_p)
    out = jax.block_until_ready(out)

    ref = head_reference(x, w_key_p, w_query_p, w_value_p)
    assert out.shape == (B, T, H), out.shape
    # Tolerance reflects bf16-input / f32-accumulate matmuls (and approx
    # reciprocal) vs. a pure-f32 reference.
    assert jnp.allclose(out, ref, atol=2e-2, rtol=2e-2), \
        float(jnp.max(jnp.abs(out - ref)))

    print("KERNEL_OK")
</pallas_src>

<mosaic_0001>
module attributes {stable_mosaic.version = 11 : i64} {
  func.func @_head_kernel(%arg0: i32, %arg1: memref<2x64x384xf32, #tpu.memory_space<vmem>>, %arg2: memref<384x192xbf16, #tpu.memory_space<vmem>>, %arg3: memref<2x64x64xf32, #tpu.memory_space<vmem>>) attributes {dimension_semantics = [#tpu.dimension_semantics<parallel>], iteration_bounds = array<i64: 1>, scalar_prefetch = 0 : i64, scratch_operands = 0 : i64, tpu.core_type = #tpu.core_type<tc>, window_params = [{transform_indices = @transform_0, window_bounds = array<i64: 2, 64, 384>}, {pipeline_mode = #tpu.pipeline_mode<synchronous>, transform_indices = @transform_1, window_bounds = array<i64: 384, 192>}, {transform_indices = @transform_2, window_bounds = array<i64: 2, 64, 64>}]} {
    %c0 = arith.constant 0 : index
    %c0_0 = arith.constant 0 : index
    %c0_1 = arith.constant 0 : index
    %0 = vector.load %arg1[%c0, %c0_0, %c0_1] : memref<2x64x384xf32, #tpu.memory_space<vmem>>, vector<2x64x384xf32>
    %1 = arith.truncf %0 : vector<2x64x384xf32> to vector<2x64x384xbf16>
    %2 = vector.shape_cast %1 : vector<2x64x384xbf16> to vector<128x384xbf16>
    %c0_2 = arith.constant 0 : index
    %c0_3 = arith.constant 0 : index
    %3 = vector.load %arg2[%c0_2, %c0_3] : memref<384x192xbf16, #tpu.memory_space<vmem>>, vector<384x192xbf16>
    %cst = arith.constant dense<0.000000e+00> : vector<128x192xf32>
    %4 = tpu.matmul %2, %3, %cst {dimension_numbers = #tpu.dot_dimension_numbers<[1], [0], [0], [1], [0, 0, 1, 1], [], []>} : vector<128x384xbf16>, vector<384x192xbf16>, vector<128x192xf32> -> vector<128x192xf32>
    %5 = vector.shape_cast %4 : vector<128x192xf32> to vector<2x64x192xf32>
    %6 = vector.extract_strided_slice %5 {offsets = [0, 0, 0], sizes = [2, 64, 64], strides = [1, 1, 1]} : vector<2x64x192xf32> to vector<2x64x64xf32>
    %7 = arith.truncf %6 : vector<2x64x64xf32> to vector<2x64x64xbf16>
    %8 = vector.extract_strided_slice %5 {offsets = [0, 0, 64], sizes = [2, 64, 64], strides = [1, 1, 1]} : vector<2x64x192xf32> to vector<2x64x64xf32>
    %9 = arith.truncf %8 : vector<2x64x64xf32> to vector<2x64x64xbf16>
    %10 = vector.extract_strided_slice %5 {offsets = [0, 0, 128], sizes = [2, 64, 64], strides = [1, 1, 1]} : vector<2x64x192xf32> to vector<2x64x64xf32>
    %11 = arith.truncf %10 : vector<2x64x64xf32> to vector<2x64x64xbf16>
    %cst_4 = arith.constant dense<0.000000e+00> : vector<2x64x64xf32>
    %12 = tpu.matmul %7, %9, %cst_4 {dimension_numbers = #tpu.dot_dimension_numbers<[2], [2], [1], [1], [0, 0, 0, 1, 1, 1], [0], [0]>} : vector<2x64x64xbf16>, vector<2x64x64xbf16>, vector<2x64x64xf32> -> vector<2x64x64xf32>
    %13 = tpu.iota {dimensions = array<i32: 0>} : vector<64x64xi32>
    %14 = tpu.iota {dimensions = array<i32: 1>} : vector<64x64xi32>
    %15 = arith.cmpi sle, %14, %13 : vector<64x64xi32>
    %cst_5 = arith.constant -1.000000e+30 : f32
    %16 = vector.shape_cast %15 : vector<64x64xi1> to vector<1x64x64xi1>
    %17 = vector.broadcast %16 : vector<1x64x64xi1> to vector<2x64x64xi1>
    %18 = vector.broadcast %cst_5 : f32 to vector<2x64x64xf32>
    %19 = arith.select %17, %12, %18 : vector<2x64x64xi1>, vector<2x64x64xf32>
    %cst_6 = arith.constant dense<0xFF800000> : vector<2x64xf32>
    %20 = vector.multi_reduction <maximumf>, %19, %cst_6 [2] : vector<2x64x64xf32> to vector<2x64xf32>
    %21 = vector.shape_cast %20 : vector<2x64xf32> to vector<2x64x1xf32>
    %22 = vector.broadcast %21 : vector<2x64x1xf32> to vector<2x64x64xf32>
    %23 = arith.subf %19, %22 : vector<2x64x64xf32>
    %24 = math.exp %23 : vector<2x64x64xf32>
    %cst_7 = arith.constant dense<0.000000e+00> : vector<2x64xf32>
    %25 = vector.multi_reduction <add>, %24, %cst_7 [2] : vector<2x64x64xf32> to vector<2x64xf32>
    %26 = vector.shape_cast %25 : vector<2x64xf32> to vector<2x64x1xf32>
    %27 = tpu.reciprocal %26 {approx = true} : vector<2x64x1xf32> -> vector<2x64x1xf32>
    %28 = vector.broadcast %27 : vector<2x64x1xf32> to vector<2x64x64xf32>
    %29 = arith.mulf %24, %28 : vector<2x64x64xf32>
    %30 = arith.truncf %29 : vector<2x64x64xf32> to vector<2x64x64xbf16>
    %cst_8 = arith.constant dense<0.000000e+00> : vector<2x64x64xf32>
    %31 = tpu.matmul %30, %11, %cst_8 {dimension_numbers = #tpu.dot_dimension_numbers<[2], [1], [1], [2], [0, 0, 0, 1, 1, 2], [0], [0]>} : vector<2x64x64xbf16>, vector<2x64x64xbf16>, vector<2x64x64xf32> -> vector<2x64x64xf32>
    %c0_9 = arith.constant 0 : index
    %c0_10 = arith.constant 0 : index
    %c0_11 = arith.constant 0 : index
    %32 = vector.load %arg3[%c0_9, %c0_10, %c0_11] : memref<2x64x64xf32, #tpu.memory_space<vmem>>, vector<2x64x64xf32>
    tpu.vector_store %arg3[%c0_9, %c0_10, %c0_11], %31 {strides = array<i32>} : memref<2x64x64xf32, #tpu.memory_space<vmem>>, vector<2x64x64xf32>,
    return
  }
  func.func @transform_0(%arg0: i32) -> (i32, i32, i32) {
    %c0_i32 = arith.constant 0 : i32
    %c0_i32_0 = arith.constant 0 : i32
    %c0_i32_1 = arith.constant 0 : i32
    return %arg0, %c0_i32, %c0_i32_0 : i32, i32, i32
  }
  func.func @transform_1(%arg0: i32) -> (i32, i32) {
    %c0_i32 = arith.constant 0 : i32
    %c0_i32_0 = arith.constant 0 : i32
    %c0_i32_1 = arith.constant 0 : i32
    return %c0_i32, %c0_i32_0 : i32, i32
  }
  func.func @transform_2(%arg0: i32) -> (i32, i32, i32) {
    %c0_i32 = arith.constant 0 : i32
    %c0_i32_0 = arith.constant 0 : i32
    %c0_i32_1 = arith.constant 0 : i32
    return %arg0, %c0_i32, %c0_i32_0 : i32, i32, i32
  }
}

</mosaic_0001>

<llo_original>
// kernel: tpu_custom_call.1
$region0: #{tpu_custom_call.1}
  #allocation0 [shape = 'u32[]', space=smem, size = 0x4, offset = 0x4, fixed_abs, tag = 'smem constant byte address 0x4 - core index']
  #allocation1 [shape = 'u32[144,128]{1,0:T(1,128)}', space=vmem, size = 0x12000, scoped, tag = 'internal scratch']
  %s0 = inlined_call_operand.vmem [shape: f32[2,64,384], index: 0, kind: input, shape index: {}]
  %s1 = inlined_call_operand.vmem [shape: bf16[384,192], index: 1, kind: input, shape index: {}]
  %s2 = inlined_call_operand.hbm [shape: f32[2,64,64], index: 2, kind: output, shape index: {}]
  %s3 = sld [smem:[#allocation0]]
  $region18: #{tpu_custom_call.1} parent=0
    _
  %s5 = ssub.s32 1, %s3
  %s6 = scalar_select 0, %s5, %s3
  $region1: #{tpu_custom_call.1} parent=0
    #allocation2 [shape = 'u8[65536]{0}', space=vmem, size = 0x10000, scoped, tag = 'output window, operand 0, single buffered']
    #allocation3 [shape = 's32[1]{0}', space=sflag, size = 0x4, scoped, tag = 'scoped memory for tpu_custom_call.1']
    %7 = vsyncpa [#allocation3], 0
    // Predicated region
    $region2: #{tpu_custom_call.1} parent=1 // pred_check
      _
    $region3: #{tpu_custom_call.1} parent=1 // pred_check_branch
      %9 = sbr.rel (0) target = $region5
    $region4: #{tpu_custom_call.1} parent=1 // pred_region
      _
    $region5: #{tpu_custom_call.1} parent=1 // pred_fallthru
      _
    // Predicated region
    $region6: #{tpu_custom_call.1} parent=1 // pred_check
      _
    $region7: #{tpu_custom_call.1} parent=1 // pred_check_branch
      %11 = sbr.rel (0) target = $region9
    $region8: #{tpu_custom_call.1} parent=1 // pred_region
      _
    $region9: #{tpu_custom_call.1} parent=1 // pred_fallthru
      _
    %v13 = vld [vmem:[%s0] sm:$0xff]
    %v14 = vld [vmem:[%s0 + $0x8] sm:$0xff]
    %v15 = vld [vmem:[%s0 + $0x10] sm:$0xff]
    %v16 = vld [vmem:[%s0 + $0x18] sm:$0xff]
    %v17 = vld [vmem:[%s0 + $0x20] sm:$0xff]
    %v18 = vld [vmem:[%s0 + $0x28] sm:$0xff]
    %v19 = vld [vmem:[%s0 + $0x30] sm:$0xff]
    %v20 = vld [vmem:[%s0 + $0x38] sm:$0xff]
    %v21 = vld [vmem:[%s0 + $0x40] sm:$0xff]
    %v22 = vld [vmem:[%s0 + $0x48] sm:$0xff]
    %v23 = vld [vmem:[%s0 + $0x50] sm:$0xff]
    %v24 = vld [vmem:[%s0 + $0x58] sm:$0xff]
    %v25 = vld [vmem:[%s0 + $0x60] sm:$0xff]
    %v26 = vld [vmem:[%s0 + $0x68] sm:$0xff]
    %v27 = vld [vmem:[%s0 + $0x70] sm:$0xff]
    %v28 = vld [vmem:[%s0 + $0x78] sm:$0xff]
    %v29 = vld [vmem:[%s0 + $0x80] sm:$0xff]
    %v30 = vld [vmem:[%s0 + $0x88] sm:$0xff]
    %v31 = vld [vmem:[%s0 + $0x90] sm:$0xff]
    %v32 = vld [vmem:[%s0 + $0x98] sm:$0xff]
    %v33 = vld [vmem:[%s0 + $0xa0] sm:$0xff]
    %v34 = vld [vmem:[%s0 + $0xa8] sm:$0xff]
    %v35 = vld [vmem:[%s0 + $0xb0] sm:$0xff]
    %v36 = vld [vmem:[%s0 + $0xb8] sm:$0xff]
    %v37 = vld [vmem:[%s0 + $0xc0] sm:$0xff]
    %v38 = vld [vmem:[%s0 + $0xc8] sm:$0xff]
    %v39 = vld [vmem:[%s0 + $0xd0] sm:$0xff]
    %v40 = vld [vmem:[%s0 + $0xd8] sm:$0xff]
    %v41 = vld [vmem:[%s0 + $0xe0] sm:$0xff]
    %v42 = vld [vmem:[%s0 + $0xe8] sm:$0xff]
    %v43 = vld [vmem:[%s0 + $0xf0] sm:$0xff]
    %v44 = vld [vmem:[%s0 + $0xf8] sm:$0xff]
    %v45 = vld [vmem:[%s0 + $0x100] sm:$0xff]
    %v46 = vld [vmem:[%s0 + $0x108] sm:$0xff]
    %v47 = vld [vmem:[%s0 + $0x110] sm:$0xff]
    %v48 = vld [vmem:[%s0 + $0x118] sm:$0xff]
    %v49 = vld [vmem:[%s0 + $0x120] sm:$0xff]
    %v50 = vld [vmem:[%s0 + $0x128] sm:$0xff]
    %v51 = vld [vmem:[%s0 + $0x130] sm:$0xff]
    %v52 = vld [vmem:[%s0 + $0x138] sm:$0xff]
    %v53 = vld [vmem:[%s0 + $0x140] sm:$0xff]
    %v54 = vld [vmem:[%s0 + $0x148] sm:$0xff]
    %v55 = vld [vmem:[%s0 + $0x150] sm:$0xff]
    %v56 = vld [vmem:[%s0 + $0x158] sm:$0xff]
    %v57 = vld [vmem:[%s0 + $0x160] sm:$0xff]
    %v58 = vld [vmem:[%s0 + $0x168] sm:$0xff]
    %v59 = vld [vmem:[%s0 + $0x170] sm:$0xff]
    %v60 = vld [vmem:[%s0 + $0x178] sm:$0xff]
    %v61 = vpack.c.bf16 %v16, %v13
    %v62 = vpack.c.bf16 %v17, %v14
    %v63 = vpack.c.bf16 %v18, %v15
    %v64 = vpack.c.bf16 %v22, %v19
    %v65 = vpack.c.bf16 %v23, %v20
    %v66 = vpack.c.bf16 %v24, %v21
    %v67 = vpack.c.bf16 %v28, %v25
    %v68 = vpack.c.bf16 %v29, %v26
    %v69 = vpack.c.bf16 %v30, %v27
    %v70 = vpack.c.bf16 %v34, %v31
    %v71 = vpack.c.bf16 %v35, %v32
    %v72 = vpack.c.bf16 %v36, %v33
    %v73 = vpack.c.bf16 %v40, %v37
    %v74 = vpack.c.bf16 %v41, %v38
    %v75 = vpack.c.bf16 %v42, %v39
    %v76 = vpack.c.bf16 %v46, %v43
    %v77 = vpack.c.bf16 %v47, %v44
    %v78 = vpack.c.bf16 %v48, %v45
    %v79 = vpack.c.bf16 %v52, %v49
    %v80 = vpack.c.bf16 %v53, %v50
    %v81 = vpack.c.bf16 %v54, %v51
    %v82 = vpack.c.bf16 %v58, %v55
    %v83 = vpack.c.bf16 %v59, %v56
    %v84 = vpack.c.bf16 %v60, %v57
    %v85 = vld [vmem:[%s1] sm:$0xff]
    %v86 = vld [vmem:[%s1 + $0x8] sm:$0xff]
    %v87 = vld [vmem:[%s1 + $0x10] sm:$0xff]
    %v88 = vld [vmem:[%s1 + $0x18] sm:$0xff]
    %v89 = vld [vmem:[%s1 + $0x20] sm:$0xff]
    %v90 = vld [vmem:[%s1 + $0x28] sm:$0xff]
    %v91 = vld [vmem:[%s1 + $0x30] sm:$0xff]
    %v92 = vld [vmem:[%s1 + $0x38] sm:$0xff]
    %v93 = vld [vmem:[%s1 + $0x40] sm:$0xff]
    %v94 = vld [vmem:[%s1 + $0x48] sm:$0xff]
    %v95 = vld [vmem:[%s1 + $0x50] sm:$0xff]
    %v96 = vld [vmem:[%s1 + $0x58] sm:$0xff]
    %v97 = vld [vmem:[%s1 + $0x60] sm:$0xff]
    %v98 = vld [vmem:[%s1 + $0x68] sm:$0xff]
    %v99 = vld [vmem:[%s1 + $0x70] sm:$0xff]
    %v100 = vld [vmem:[%s1 + $0x78] sm:$0xff]
    %v101 = vld [vmem:[%s1 + $0x80] sm:$0xff]
    %v102 = vld [vmem:[%s1 + $0x88] sm:$0xff]
    %v103 = vld [vmem:[%s1 + $0x90] sm:$0xff]
    %v104 = vld [vmem:[%s1 + $0x98] sm:$0xff]
    %v105 = vld [vmem:[%s1 + $0xa0] sm:$0xff]
    %v106 = vld [vmem:[%s1 + $0xa8] sm:$0xff]
    %v107 = vld [vmem:[%s1 + $0xb0] sm:$0xff]
    %v108 = vld [vmem:[%s1 + $0xb8] sm:$0xff]
    %v109 = vld [vmem:[%s1 + $0xc0] sm:$0xff]
    %v110 = vld [vmem:[%s1 + $0xc8] sm:$0xff]
    %v111 = vld [vmem:[%s1 + $0xd0] sm:$0xff]
    %v112 = vld [vmem:[%s1 + $0xd8] sm:$0xff]
    %v113 = vld [vmem:[%s1 + $0xe0] sm:$0xff]
    %v114 = vld [vmem:[%s1 + $0xe8] sm:$0xff]
    %v115 = vld [vmem:[%s1 + $0xf0] sm:$0xff]
    %v116 = vld [vmem:[%s1 + $0xf8] sm:$0xff]
    %v117 = vld [vmem:[%s1 + $0x100] sm:$0xff]
    %v118 = vld [vmem:[%s1 + $0x108] sm:$0xff]
    %v119 = vld [vmem:[%s1 + $0x110] sm:$0xff]
    %v120 = vld [vmem:[%s1 + $0x118] sm:$0xff]
    %v121 = vld [vmem:[%s1 + $0x120] sm:$0xff]
    %v122 = vld [vmem:[%s1 + $0x128] sm:$0xff]
    %v123 = vld [vmem:[%s1 + $0x130] sm:$0xff]
    %v124 = vld [vmem:[%s1 + $0x138] sm:$0xff]
    %v125 = vld [vmem:[%s1 + $0x140] sm:$0xff]
    %v126 = vld [vmem:[%s1 + $0x148] sm:$0xff]
    %v127 = vld [vmem:[%s1 + $0x150] sm:$0xff]
    %v128 = vld [vmem:[%s1 + $0x158] sm:$0xff]
    %v129 = vld [vmem:[%s1 + $0x160] sm:$0xff]
    %v130 = vld [vmem:[%s1 + $0x168] sm:$0xff]
    %v131 = vld [vmem:[%s1 + $0x170] sm:$0xff]
    %v132 = vld [vmem:[%s1 + $0x178] sm:$0xff]
    %v181 = vunpack.c.l.b16 %v85
    %v182 = vunpack.c.h.b16 %v85
    %v183 = vunpack.c.l.b16 %v86
    %v184 = vunpack.c.h.b16 %v86
    %v185 = vunpack.c.l.b16 %v87
    %v186 = vunpack.c.h.b16 %v87
    %v187 = vunpack.c.l.b16 %v88
    %v188 = vunpack.c.h.b16 %v88
    %v189 = vunpack.c.l.b16 %v89
    %v190 = vunpack.c.h.b16 %v89
    %v191 = vunpack.c.l.b16 %v90
    %v192 = vunpack.c.h.b16 %v90
    %v193 = vunpack.c.l.b16 %v91
    %v194 = vunpack.c.h.b16 %v91
    %v195 = vunpack.c.l.b16 %v92
    %v196 = vunpack.c.h.b16 %v92
    %v197 = vunpack.c.l.b16 %v93
    %v198 = vunpack.c.h.b16 %v93
    %v199 = vunpack.c.l.b16 %v94
    %v200 = vunpack.c.h.b16 %v94
    %v201 = vunpack.c.l.b16 %v95
    %v202 = vunpack.c.h.b16 %v95
    %v203 = vunpack.c.l.b16 %v96
    %v204 = vunpack.c.h.b16 %v96
    %v205 = vunpack.c.l.b16 %v97
    %v206 = vunpack.c.h.b16 %v97
    %v207 = vunpack.c.l.b16 %v98
    %v208 = vunpack.c.h.b16 %v98
    %v209 = vunpack.c.l.b16 %v99
    %v210 = vunpack.c.h.b16 %v99
    %v211 = vunpack.c.l.b16 %v100
    %v212 = vunpack.c.h.b16 %v100
    %v213 = vunpack.c.l.b16 %v101
    %v214 = vunpack.c.h.b16 %v101
    %v215 = vunpack.c.l.b16 %v102
    %v216 = vunpack.c.h.b16 %v102
    %v217 = vunpack.c.l.b16 %v103
    %v218 = vunpack.c.h.b16 %v103
    %v219 = vunpack.c.l.b16 %v104
    %v220 = vunpack.c.h.b16 %v104
    %v221 = vunpack.c.l.b16 %v105
    %v222 = vunpack.c.h.b16 %v105
    %v223 = vunpack.c.l.b16 %v106
    %v224 = vunpack.c.h.b16 %v106
    %v225 = vunpack.c.l.b16 %v107
    %v226 = vunpack.c.h.b16 %v107
    %v227 = vunpack.c.l.b16 %v108
    %v228 = vunpack.c.h.b16 %v108
    %v229 = vunpack.c.l.b16 %v109
    %v230 = vunpack.c.h.b16 %v109
    %v231 = vunpack.c.l.b16 %v110
    %v232 = vunpack.c.h.b16 %v110
    %v233 = vunpack.c.l.b16 %v111
    %v234 = vunpack.c.h.b16 %v111
    %v235 = vunpack.c.l.b16 %v112
    %v236 = vunpack.c.h.b16 %v112
    %v237 = vunpack.c.l.b16 %v113
    %v238 = vunpack.c.h.b16 %v113
    %v239 = vunpack.c.l.b16 %v114
    %v240 = vunpack.c.h.b16 %v114
    %v241 = vunpack.c.l.b16 %v115
    %v242 = vunpack.c.h.b16 %v115
    %v243 = vunpack.c.l.b16 %v116
    %v244 = vunpack.c.h.b16 %v116
    %v245 = vunpack.c.l.b16 %v117
    %v246 = vunpack.c.h.b16 %v117
    %v247 = vunpack.c.l.b16 %v118
    %v248 = vunpack.c.h.b16 %v118
    %v249 = vunpack.c.l.b16 %v119
    %v250 = vunpack.c.h.b16 %v119
    %v251 = vunpack.c.l.b16 %v120
    %v252 = vunpack.c.h.b16 %v120
    %v253 = vunpack.c.l.b16 %v121
    %v254 = vunpack.c.h.b16 %v121
    %v255 = vunpack.c.l.b16 %v122
    %v256 = vunpack.c.h.b16 %v122
    %v257 = vunpack.c.l.b16 %v123
    %v258 = vunpack.c.h.b16 %v123
    %v259 = vunpack.c.l.b16 %v124
    %v260 = vunpack.c.h.b16 %v124
    %v261 = vunpack.c.l.b16 %v125
    %v262 = vunpack.c.h.b16 %v125
    %v263 = vunpack.c.l.b16 %v126
    %v264 = vunpack.c.h.b16 %v126
    %v265 = vunpack.c.l.b16 %v127
    %v266 = vunpack.c.h.b16 %v127
    %v267 = vunpack.c.l.b16 %v128
    %v268 = vunpack.c.h.b16 %v128
    %v269 = vunpack.c.l.b16 %v129
    %v270 = vunpack.c.h.b16 %v129
    %v271 = vunpack.c.l.b16 %v130
    %v272 = vunpack.c.h.b16 %v130
    %v273 = vunpack.c.l.b16 %v131
    %v274 = vunpack.c.h.b16 %v131
    %v275 = vunpack.c.l.b16 %v132
    %v276 = vunpack.c.h.b16 %v132
    %v277 = vpack.c.b16 %v183, %v181
    %v278 = vpack.c.b16 %v184, %v182
    %v279 = vpack.c.b16 %v187, %v185
    %v280 = vpack.c.b16 %v188, %v186
    %v281 = vpack.c.b16 %v191, %v189
    %v282 = vpack.c.b16 %v192, %v190
    %v283 = vpack.c.b16 %v195, %v193
    %v284 = vpack.c.b16 %v196, %v194
    %v285 = vpack.c.b16 %v199, %v197
    %v286 = vpack.c.b16 %v200, %v198
    %v287 = vpack.c.b16 %v203, %v201
    %v288 = vpack.c.b16 %v204, %v202
    %v289 = vpack.c.b16 %v207, %v205
    %v290 = vpack.c.b16 %v208, %v206
    %v291 = vpack.c.b16 %v211, %v209
    %v292 = vpack.c.b16 %v212, %v210
    %v293 = vpack.c.b16 %v215, %v213
    %v294 = vpack.c.b16 %v216, %v214
    %v295 = vpack.c.b16 %v219, %v217
    %v296 = vpack.c.b16 %v220, %v218
    %v297 = vpack.c.b16 %v223, %v221
    %v298 = vpack.c.b16 %v224, %v222
    %v299 = vpack.c.b16 %v227, %v225
    %v300 = vpack.c.b16 %v228, %v226
    %v301 = vpack.c.b16 %v231, %v229
    %v302 = vpack.c.b16 %v232, %v230
    %v303 = vpack.c.b16 %v235, %v233
    %v304 = vpack.c.b16 %v236, %v234
    %v305 = vpack.c.b16 %v239, %v237
    %v306 = vpack.c.b16 %v240, %v238
    %v307 = vpack.c.b16 %v243, %v241
    %v308 = vpack.c.b16 %v244, %v242
    %v309 = vpack.c.b16 %v247, %v245
    %v310 = vpack.c.b16 %v248, %v246
    %v311 = vpack.c.b16 %v251, %v249
    %v312 = vpack.c.b16 %v252, %v250
    %v313 = vpack.c.b16 %v255, %v253
    %v314 = vpack.c.b16 %v256, %v254
    %v315 = vpack.c.b16 %v259, %v257
    %v316 = vpack.c.b16 %v260, %v258
    %v317 = vpack.c.b16 %v263, %v261
    %v318 = vpack.c.b16 %v264, %v262
    %v319 = vpack.c.b16 %v267, %v265
    %v320 = vpack.c.b16 %v268, %v266
    %v321 = vpack.c.b16 %v271, %v269
    %v322 = vpack.c.b16 %v272, %v270
    %v323 = vpack.c.b16 %v275, %v273
    %v324 = vpack.c.b16 %v276, %v274
    %373 = vmatprep.subr.bf16.mxu0 %v278
    %374 = vmatpush1.bf16.msra.mxu0 %v277
    %375 = vmatprep.subr.bf16.mxu0 %v280
    %376 = vmatpush1.bf16.msra.mxu0 %v279
    %377 = vmatprep.subr.bf16.mxu0 %v282
    %378 = vmatpush1.bf16.msra.mxu0 %v281
    %379 = vmatprep.subr.bf16.mxu0 %v284
    %380 = vmatpush1.bf16.msra.mxu0 %v283
    %381 = vmatprep.subr.bf16.mxu0 %v286
    %382 = vmatpush1.bf16.msra.mxu0 %v285
    %383 = vmatprep.subr.bf16.mxu0 %v288
    %384 = vmatpush1.bf16.msra.mxu0 %v287
    %385 = vmatprep.subr.bf16.mxu0 %v290
    %386 = vmatpush1.bf16.msra.mxu0 %v289
    %387 = vmatprep.subr.bf16.mxu0 %v292
    %388 = vmatpush1.bf16.msra.mxu0 %v291
    %389 = vmatprep.subr.bf16.mxu0 %v294
    %390 = vmatpush1.bf16.msra.mxu0 %v293
    %391 = vmatprep.subr.bf16.mxu0 %v296
    %392 = vmatpush1.bf16.msra.mxu0 %v295
    %393 = vmatprep.subr.bf16.mxu0 %v298
    %394 = vmatpush1.bf16.msra.mxu0 %v297
    %395 = vmatprep.subr.bf16.mxu0 %v300
    %396 = vmatpush1.bf16.msra.mxu0 %v299
    %397 = vmatprep.subr.bf16.mxu0 %v302
    %398 = vmatpush1.bf16.msra.mxu0 %v301
    %399 = vmatprep.subr.bf16.mxu0 %v304
    %400 = vmatpush1.bf16.msra.mxu0 %v303
    %401 = vmatprep.subr.bf16.mxu0 %v306
    %402 = vmatpush1.bf16.msra.mxu0 %v305
    %403 = vmatprep.subr.bf16.mxu0 %v308
    %404 = vmatpush1.bf16.msra.mxu0 %v307
    %405 = vmatprep.mubr.bf16.mxu0 %v62
    %406 = vmatmul.mubr.bf16.gmra.mrb[0].mxu0 %v61
    %v407 = vpop.f32.mrb[0].mxu0
    %v408 = vadd.f32 0.0, %v407
    %v409 = vpop.f32.mrb[0].mxu0
    %v410 = vadd.f32 0.0, %v409
    %v411 = vpop.f32.mrb[0].mxu0
    %v412 = vadd.f32 0.0, %v411
    %v413 = vpop.f32.mrb[0].mxu0
    %v414 = vadd.f32 0.0, %v413
    %415 = vmatprep.mubr.bf16.mxu0 %v65
    %416 = vmatmul.mubr.bf16.gmra.mrb[0].mxu0 %v64
    %v417 = vpop.f32.mrb[0].mxu0
    %v418 = vadd.f32 0.0, %v417
    %v419 = vpop.f32.mrb[0].mxu0
    %v420 = vadd.f32 0.0, %v419
    %v421 = vpop.f32.mrb[0].mxu0
    %v422 = vadd.f32 0.0, %v421
    %v423 = vpop.f32.mrb[0].mxu0
    %v424 = vadd.f32 0.0, %v423
    %425 = vmatprep.mubr.bf16.mxu0 %v68
    %426 = vmatmul.mubr.bf16.gmra.mrb[0].mxu0 %v67
    %v427 = vpop.f32.mrb[0].mxu0
    %v428 = vadd.f32 0.0, %v427
    %v429 = vpop.f32.mrb[0].mxu0
    %v430 = vadd.f32 0.0, %v429
    %v431 = vpop.f32.mrb[0].mxu0
    %v432 = vadd.f32 0.0, %v431
    %v433 = vpop.f32.mrb[0].mxu0
    %v434 = vadd.f32 0.0, %v433
    %435 = vmatprep.mubr.bf16.mxu0 %v71
    %436 = vmatmul.mubr.bf16.gmra.mrb[0].mxu0 %v70
    %v437 = vpop.f32.mrb[0].mxu0
    %v438 = vadd.f32 0.0, %v437
    %v439 = vpop.f32.mrb[0].mxu0
    %v440 = vadd.f32 0.0, %v439
    %v441 = vpop.f32.mrb[0].mxu0
    %v442 = vadd.f32 0.0, %v441
    %v443 = vpop.f32.mrb[0].mxu0
    %v444 = vadd.f32 0.0, %v443
    %445 = vmatprep.mubr.bf16.mxu0 %v74
    %446 = vmatmul.mubr.bf16.gmra.mrb[0].mxu0 %v73
    %v447 = vpop.f32.mrb[0].mxu0
    %v448 = vadd.f32 0.0, %v447
    %v449 = vpop.f32.mrb[0].mxu0
    %v450 = vadd.f32 0.0, %v449
    %v451 = vpop.f32.mrb[0].mxu0
    %v452 = vadd.f32 0.0, %v451
    %v453 = vpop.f32.mrb[0].mxu0
    %v454 = vadd.f32 0.0, %v453
    %455 = vmatprep.mubr.bf16.mxu0 %v77
    %456 = vmatmul.mubr.bf16.gmra.mrb[0].mxu0 %v76
    %v457 = vpop.f32.mrb[0].mxu0
    %v458 = vadd.f32 0.0, %v457
    %v459 = vpop.f32.mrb[0].mxu0
    %v460 = vadd.f32 0.0, %v459
    %v461 = vpop.f32.mrb[0].mxu0
    %v462 = vadd.f32 0.0, %v461
    %v463 = vpop.f32.mrb[0].mxu0
    %v464 = vadd.f32 0.0, %v463
    %465 = vmatprep.mubr.bf16.mxu0 %v80
    %466 = vmatmul.mubr.bf16.gmra.mrb[0].mxu0 %v79
    %v467 = vpop.f32.mrb[0].mxu0
    %v468 = vadd.f32 0.0, %v467
    %v469 = vpop.f32.mrb[0].mxu0
    %v470 = vadd.f32 0.0, %v469
    %v471 = vpop.f32.mrb[0].mxu0
    %v472 = vadd.f32 0.0, %v471
    %v473 = vpop.f32.mrb[0].mxu0
    %v474 = vadd.f32 0.0, %v473
    %475 = vmatprep.mubr.bf16.mxu0 %v83
    %476 = vmatmul.mubr.bf16.gmra.mrb[0].mxu0 %v82
    %v477 = vpop.f32.mrb[0].mxu0
    %v478 = vadd.f32 0.0, %v477
    %v479 = vpop.f32.mrb[0].mxu0
    %v480 = vadd.f32 0.0, %v479
    %v481 = vpop.f32.mrb[0].mxu0
    %v482 = vadd.f32 0.0, %v481
    %v483 = vpop.f32.mrb[0].mxu0
    %v484 = vadd.f32 0.0, %v483
    %485 = vdwg.mxu0
    %486 = vmatprep.subr.bf16.mxu0 %v310
    %487 = vmatpush1.bf16.msra.mxu0 %v309
    %488 = vmatprep.subr.bf16.mxu0 %v312
    %489 = vmatpush1.bf16.msra.mxu0 %v311
    %490 = vmatprep.subr.bf16.mxu0 %v314
    %491 = vmatpush1.bf16.msra.mxu0 %v313
    %492 = vmatprep.subr.bf16.mxu0 %v316
    %493 = vmatpush1.bf16.msra.mxu0 %v315
    %494 = vmatprep.subr.bf16.mxu0 %v318
    %495 = vmatpush1.bf16.msra.mxu0 %v317
    %496 = vmatprep.subr.bf16.mxu0 %v320
    %497 = vmatpush1.bf16.msra.mxu0 %v319
    %498 = vmatprep.subr.bf16.mxu0 %v322
    %499 = vmatpush1.bf16.msra.mxu0 %v321
    %500 = vmatprep.subr.bf16.mxu0 %v324
    %501 = vmatpush1.bf16.msra.mxu0 %v323
    %502 = vmatprep.subr.bf16.mxu0 0
    %503 = vmatpush1.bf16.msra.mxu0 0
    %504 = vmatprep.subr.bf16.mxu0 0
    %505 = vmatpush1.bf16.msra.mxu0 0
    %506 = vmatprep.subr.bf16.mxu0 0
    %507 = vmatpush1.bf16.msra.mxu0 0
    %508 = vmatprep.subr.bf16.mxu0 0
    %509 = vmatpush1.bf16.msra.mxu0 0
    %510 = vmatprep.subr.bf16.mxu0 0
    %511 = vmatpush1.bf16.msra.mxu0 0
    %512 = vmatprep.subr.bf16.mxu0 0
    %513 = vmatpush1.bf16.msra.mxu0 0
    %514 = vmatprep.subr.bf16.mxu0 0
    %515 = vmatpush1.bf16.msra.mxu0 0
    %516 = vmatprep.subr.bf16.mxu0 0
    %517 = vmatpush1.bf16.msra.mxu0 0
    %518 = vmatprep.mubr.bf16.mxu0 0
    %519 = vmatmul.mubr.bf16.gmra.mrb[0].mxu0 %v63
    %v520 = vpop.f32.mrb[0].mxu0
    %v521 = vadd.f32 %v408, %v520
    %v522 = vpop.f32.mrb[0].mxu0
    %v523 = vadd.f32 %v410, %v522
    %v524 = vpop.f32.mrb[0].mxu0
    %v525 = vadd.f32 %v412, %v524
    %v526 = vpop.f32.mrb[0].mxu0
    %v527 = vadd.f32 %v414, %v526
    %528 = vmatprep.mubr.bf16.mxu0 0
    %529 = vmatmul.mubr.bf16.gmra.mrb[0].mxu0 %v66
    %v530 = vpop.f32.mrb[0].mxu0
    %v531 = vadd.f32 %v418, %v530
    %v532 = vpop.f32.mrb[0].mxu0
    %v533 = vadd.f32 %v420, %v532
    %v534 = vpop.f32.mrb[0].mxu0
    %v535 = vadd.f32 %v422, %v534
    %v536 = vpop.f32.mrb[0].mxu0
    %v537 = vadd.f32 %v424, %v536
    %538 = vmatprep.mubr.bf16.mxu0 0
    %539 = vmatmul.mubr.bf16.gmra.mrb[0].mxu0 %v69
    %v540 = vpop.f32.mrb[0].mxu0
    %v541 = vadd.f32 %v428, %v540
    %v542 = vpop.f32.mrb[0].mxu0
    %v543 = vadd.f32 %v430, %v542
    %v544 = vpop.f32.mrb[0].mxu0
    %v545 = vadd.f32 %v432, %v544
    %v546 = vpop.f32.mrb[0].mxu0
    %v547 = vadd.f32 %v434, %v546
    %548 = vmatprep.mubr.bf16.mxu0 0
    %549 = vmatmul.mubr.bf16.gmra.mrb[0].mxu0 %v72
    %v550 = vpop.f32.mrb[0].mxu0
    %v551 = vadd.f32 %v438, %v550
    %v552 = vpop.f32.mrb[0].mxu0
    %v553 = vadd.f32 %v440, %v552
    %v554 = vpop.f32.mrb[0].mxu0
    %v555 = vadd.f32 %v442, %v554
    %v556 = vpop.f32.mrb[0].mxu0
    %v557 = vadd.f32 %v444, %v556
    %558 = vmatprep.mubr.bf16.mxu0 0
    %559 = vmatmul.mubr.bf16.gmra.mrb[0].mxu0 %v75
    %v560 = vpop.f32.mrb[0].mxu0
    %v561 = vadd.f32 %v448, %v560
    %v562 = vpop.f32.mrb[0].mxu0
    %v563 = vadd.f32 %v450, %v562
    %v564 = vpop.f32.mrb[0].mxu0
    %v565 = vadd.f32 %v452, %v564
    %v566 = vpop.f32.mrb[0].mxu0
    %v567 = vadd.f32 %v454, %v566
    %568 = vmatprep.mubr.bf16.mxu0 0
    %569 = vmatmul.mubr.bf16.gmra.mrb[0].mxu0 %v78
    %v570 = vpop.f32.mrb[0].mxu0
    %v571 = vadd.f32 %v458, %v570
    %v572 = vpop.f32.mrb[0].mxu0
    %v573 = vadd.f32 %v460, %v572
    %v574 = vpop.f32.mrb[0].mxu0
    %v575 = vadd.f32 %v462, %v574
    %v576 = vpop.f32.mrb[0].mxu0
    %v577 = vadd.f32 %v464, %v576
    %578 = vmatprep.mubr.bf16.mxu0 0
    %579 = vmatmul.mubr.bf16.gmra.mrb[0].mxu0 %v81
    %v580 = vpop.f32.mrb[0].mxu0
    %v581 = vadd.f32 %v468, %v580
    %v582 = vpop.f32.mrb[0].mxu0
    %v583 = vadd.f32 %v470, %v582
    %v584 = vpop.f32.mrb[0].mxu0
    %v585 = vadd.f32 %v472, %v584
    %v586 = vpop.f32.mrb[0].mxu0
    %v587 = vadd.f32 %v474, %v586
    %588 = vmatprep.mubr.bf16.mxu0 0
    %589 = vmatmul.mubr.bf16.gmra.mrb[0].mxu0 %v84
    %v590 = vpop.f32.mrb[0].mxu0
    %v591 = vadd.f32 %v478, %v590
    %v592 = vpop.f32.mrb[0].mxu0
    %v593 = vadd.f32 %v480, %v592
    %v594 = vpop.f32.mrb[0].mxu0
    %v595 = vadd.f32 %v482, %v594
    %v596 = vpop.f32.mrb[0].mxu0
    %v597 = vadd.f32 %v484, %v596
    %598 = vdwg.mxu0
    %v599 = vpack.c.bf16 %v525, %v521
    %v600 = vpack.c.bf16 %v535, %v531
    %v601 = vpack.c.bf16 %v545, %v541
    %v602 = vpack.c.bf16 %v555, %v551
    %v603 = vpack.c.bf16 %v565, %v561
    %v604 = vpack.c.bf16 %v575, %v571
    %v605 = vpack.c.bf16 %v585, %v581
    %v606 = vpack.c.bf16 %v595, %v591
    %v607 = vpack.c.bf16 %v527, %v523
    %v608 = vpack.c.bf16 %v537, %v533
    %v609 = vpack.c.bf16 %v547, %v543
    %v610 = vpack.c.bf16 %v557, %v553
    %v611 = vpack.c.bf16 %v567, %v563
    %v612 = vpack.c.bf16 %v577, %v573
    %v613 = vpack.c.bf16 %v587, %v583
    %v614 = vpack.c.bf16 %v597, %v593
    %619 = vrot.lane.b32.xlu0 %v599, 64
    %v620 = vpop.permute.xlu0 %619
    %621 = vrot.lane.b32.xlu0 %v600, 64
    %v622 = vpop.permute.xlu0 %621
    %623 = vrot.lane.b32.xlu0 %v601, 64
    %v624 = vpop.permute.xlu0 %623
    %625 = vrot.lane.b32.xlu0 %v602, 64
    %v626 = vpop.permute.xlu0 %625
    %vm627 = vcmask 523264
    %v629 = vsel %vm627, %v599, 0
    %v632 = vsel %vm627, %v600, 0
    %v635 = vsel %vm627, %v601, 0
    %v638 = vsel %vm627, %v602, 0
    %v641 = vsel %vm627, %v620, 0
    %v644 = vsel %vm627, %v622, 0
    %v647 = vsel %vm627, %v624, 0
    %v650 = vsel %vm627, %v626, 0
    %652 = vmatprep.subr.bf16.mxu0 0
    %653 = vmatpush1.bf16.xpose.msra.mxu0 %v641
    %654 = vmatprep.subr.bf16.mxu0 0
    %655 = vmatpush1.bf16.xpose.msra.mxu0 %v644
    %656 = vmatprep.subr.bf16.mxu0 0
    %657 = vmatpush1.bf16.xpose.msra.mxu0 %v647
    %658 = vmatprep.subr.bf16.mxu0 0
    %659 = vmatpush1.bf16.xpose.msra.mxu0 %v650
    %660 = vmatprep.subr.bf16.mxu0 0
    %661 = vmatpush1.bf16.xpose.msra.mxu0 0
    %662 = vmatprep.subr.bf16.mxu0 0
    %663 = vmatpush1.bf16.xpose.msra.mxu0 0
    %664 = vmatprep.subr.bf16.mxu0 0
    %665 = vmatpush1.bf16.xpose.msra.mxu0 0
    %666 = vmatprep.subr.bf16.mxu0 0
    %667 = vmatpush1.bf16.xpose.msra.mxu0 0
    %668 = vmatprep.subr.bf16.mxu0 0
    %669 = vmatpush1.bf16.xpose.msra.mxu0 0
    %670 = vmatprep.subr.bf16.mxu0 0
    %671 = vmatpush1.bf16.xpose.msra.mxu0 0
    %672 = vmatprep.subr.bf16.mxu0 0
    %673 = vmatpush1.bf16.xpose.msra.mxu0 0
    %674 = vmatprep.subr.bf16.mxu0 0
    %675 = vmatpush1.bf16.xpose.msra.mxu0 0
    %676 = vmatprep.subr.bf16.mxu0 0
    %677 = vmatpush1.bf16.xpose.msra.mxu0 0
    %678 = vmatprep.subr.bf16.mxu0 0
    %679 = vmatpush1.bf16.xpose.msra.mxu0 0
    %680 = vmatprep.subr.bf16.mxu0 0
    %681 = vmatpush1.bf16.xpose.msra.mxu0 0
    %682 = vmatprep.subr.bf16.mxu0 0
    %683 = vmatpush1.bf16.xpose.msra.mxu0 0
    %684 = vmatprep.mubr.bf16.mxu0 0
    %685 = vmatmul.mubr.bf16.gmra.mrb[0].mxu0 %v629
    %v686 = vpop.f32.mrb[0].mxu0
    %v687 = vadd.f32 0.0, %v686
    %v688 = vpop.f32.mrb[0].mxu0
    %v689 = vpop.f32.mrb[0].mxu0
    %v690 = vadd.f32 0.0, %v689
    %v691 = vpop.f32.mrb[0].mxu0
    %692 = vmatprep.mubr.bf16.mxu0 0
    %693 = vmatmul.mubr.bf16.gmra.mrb[0].mxu0 %v632
    %v694 = vpop.f32.mrb[0].mxu0
    %v695 = vadd.f32 0.0, %v694
    %v696 = vpop.f32.mrb[0].mxu0
    %v697 = vpop.f32.mrb[0].mxu0
    %v698 = vadd.f32 0.0, %v697
    %v699 = vpop.f32.mrb[0].mxu0
    %700 = vmatprep.mubr.bf16.mxu0 0
    %701 = vmatmul.mubr.bf16.gmra.mrb[0].mxu0 %v635
    %v702 = vpop.f32.mrb[0].mxu0
    %v703 = vadd.f32 0.0, %v702
    %v704 = vpop.f32.mrb[0].mxu0
    %v705 = vpop.f32.mrb[0].mxu0
    %v706 = vadd.f32 0.0, %v705
    %v707 = vpop.f32.mrb[0].mxu0
    %708 = vmatprep.mubr.bf16.mxu0 0
    %709 = vmatmul.mubr.bf16.gmra.mrb[0].mxu0 %v638
    %v710 = vpop.f32.mrb[0].mxu0
    %v711 = vadd.f32 0.0, %v710
    %v712 = vpop.f32.mrb[0].mxu0
    %v713 = vpop.f32.mrb[0].mxu0
    %v714 = vadd.f32 0.0, %v713
    %v715 = vpop.f32.mrb[0].mxu0
    %716 = vdwg.mxu0
    %721 = vrot.lane.b32.xlu0 %v603, 64
    %v722 = vpop.permute.xlu0 %721
    %723 = vrot.lane.b32.xlu0 %v604, 64
    %v724 = vpop.permute.xlu0 %723
    %725 = vrot.lane.b32.xlu0 %v605, 64
    %v726 = vpop.permute.xlu0 %725
    %727 = vrot.lane.b32.xlu0 %v606, 64
    %v728 = vpop.permute.xlu0 %727
    %v730 = vsel %vm627, %v603, 0
    %v733 = vsel %vm627, %v604, 0
    %v736 = vsel %vm627, %v605, 0
    %v739 = vsel %vm627, %v606, 0
    %v742 = vsel %vm627, %v722, 0
    %v745 = vsel %vm627, %v724, 0
    %v748 = vsel %vm627, %v726, 0
    %v751 = vsel %vm627, %v728, 0
    %753 = vmatprep.subr.bf16.mxu0 0
    %754 = vmatpush1.bf16.xpose.msra.mxu0 %v742
    %755 = vmatprep.subr.bf16.mxu0 0
    %756 = vmatpush1.bf16.xpose.msra.mxu0 %v745
    %757 = vmatprep.subr.bf16.mxu0 0
    %758 = vmatpush1.bf16.xpose.msra.mxu0 %v748
    %759 = vmatprep.subr.bf16.mxu0 0
    %760 = vmatpush1.bf16.xpose.msra.mxu0 %v751
    %761 = vmatprep.subr.bf16.mxu0 0
    %762 = vmatpush1.bf16.xpose.msra.mxu0 0
    %763 = vmatprep.subr.bf16.mxu0 0
    %764 = vmatpush1.bf16.xpose.msra.mxu0 0
    %765 = vmatprep.subr.bf16.mxu0 0
    %766 = vmatpush1.bf16.xpose.msra.mxu0 0
    %767 = vmatprep.subr.bf16.mxu0 0
    %768 = vmatpush1.bf16.xpose.msra.mxu0 0
    %769 = vmatprep.subr.bf16.mxu0 0
    %770 = vmatpush1.bf16.xpose.msra.mxu0 0
    %771 = vmatprep.subr.bf16.mxu0 0
    %772 = vmatpush1.bf16.xpose.msra.mxu0 0
    %773 = vmatprep.subr.bf16.mxu0 0
    %774 = vmatpush1.bf16.xpose.msra.mxu0 0
    %775 = vmatprep.subr.bf16.mxu0 0
    %776 = vmatpush1.bf16.xpose.msra.mxu0 0
    %777 = vmatprep.subr.bf16.mxu0 0
    %778 = vmatpush1.bf16.xpose.msra.mxu0 0
    %779 = vmatprep.subr.bf16.mxu0 0
    %780 = vmatpush1.bf16.xpose.msra.mxu0 0
    %781 = vmatprep.subr.bf16.mxu0 0
    %782 = vmatpush1.bf16.xpose.msra.mxu0 0
    %783 = vmatprep.subr.bf16.mxu0 0
    %784 = vmatpush1.bf16.xpose.msra.mxu0 0
    %785 = vmatprep.mubr.bf16.mxu0 0
    %786 = vmatmul.mubr.bf16.gmra.mrb[0].mxu0 %v730
    %v787 = vpop.f32.mrb[0].mxu0
    %v788 = vadd.f32 0.0, %v787
    %v789 = vpop.f32.mrb[0].mxu0
    %v790 = vpop.f32.mrb[0].mxu0
    %v791 = vadd.f32 0.0, %v790
    %v792 = vpop.f32.mrb[0].mxu0
    %793 = vmatprep.mubr.bf16.mxu0 0
    %794 = vmatmul.mubr.bf16.gmra.mrb[0].mxu0 %v733
    %v795 = vpop.f32.mrb[0].mxu0
    %v796 = vadd.f32 0.0, %v795
    %v797 = vpop.f32.mrb[0].mxu0
    %v798 = vpop.f32.mrb[0].mxu0
    %v799 = vadd.f32 0.0, %v798
    %v800 = vpop.f32.mrb[0].mxu0
    %801 = vmatprep.mubr.bf16.mxu0 0
    %802 = vmatmul.mubr.bf16.gmra.mrb[0].mxu0 %v736
    %v803 = vpop.f32.mrb[0].mxu0
    %v804 = vadd.f32 0.0, %v803
    %v805 = vpop.f32.mrb[0].mxu0
    %v806 = vpop.f32.mrb[0].mxu0
    %v807 = vadd.f32 0.0, %v806
    %v808 = vpop.f32.mrb[0].mxu0
    %809 = vmatprep.mubr.bf16.mxu0 0
    %810 = vmatmul.mubr.bf16.gmra.mrb[0].mxu0 %v739
    %v811 = vpop.f32.mrb[0].mxu0
    %v812 = vadd.f32 0.0, %v811
    %v813 = vpop.f32.mrb[0].mxu0
    %v814 = vpop.f32.mrb[0].mxu0
    %v815 = vadd.f32 0.0, %v814
    %v816 = vpop.f32.mrb[0].mxu0
    %817 = vdwg.mxu0
    %v818 = vlaneseq
    %v819 = vshrl.u32 %v818, 7
    %v820 = vadd.s32 %v819, 8
    %v821 = vadd.s32 %v819, 16
    %v822 = vadd.s32 %v819, 24
    %v823 = vadd.s32 %v819, 32
    %v824 = vadd.s32 %v819, 40
    %v825 = vadd.s32 %v819, 48
    %v826 = vadd.s32 %v819, 56
    %v827 = vlaneseq
    %v828 = vand.u32 %v827, 127
    %vm829 = vcmp.le.s32.totalorder %v828, %v819
    %vm830 = vcmp.le.s32.totalorder %v828, %v820
    %vm831 = vcmp.le.s32.totalorder %v828, %v821
    %vm832 = vcmp.le.s32.totalorder %v828, %v822
    %vm833 = vcmp.le.s32.totalorder %v828, %v823
    %vm834 = vcmp.le.s32.totalorder %v828, %v824
    %vm835 = vcmp.le.s32.totalorder %v828, %v825
    %vm836 = vcmp.le.s32.totalorder %v828, %v826
    %v837 = vsel %vm829, 1, 0
    %v838 = vsel %vm830, 1, 0
    %v839 = vsel %vm831, 1, 0
    %v840 = vsel %vm832, 1, 0
    %v841 = vsel %vm833, 1, 0
    %v842 = vsel %vm834, 1, 0
    %v843 = vsel %vm835, 1, 0
    %v844 = vsel %vm836, 1, 0
    %vm845 = vcmp.eq.s32.totalorder %v837, 1
    %vm846 = vcmp.eq.s32.totalorder %v838, 1
    %vm847 = vcmp.eq.s32.totalorder %v839, 1
    %vm848 = vcmp.eq.s32.totalorder %v840, 1
    %vm849 = vcmp.eq.s32.totalorder %v841, 1
    %vm850 = vcmp.eq.s32.totalorder %v842, 1
    %vm851 = vcmp.eq.s32.totalorder %v843, 1
    %vm852 = vcmp.eq.s32.totalorder %v844, 1
    %v853 = vsel %vm845, %v687, -1e+30
    %v854 = vsel %vm846, %v690, -1e+30
    %v855 = vsel %vm847, %v695, -1e+30
    %v856 = vsel %vm848, %v698, -1e+30
    %v857 = vsel %vm849, %v703, -1e+30
    %v858 = vsel %vm850, %v706, -1e+30
    %v859 = vsel %vm851, %v711, -1e+30
    %v860 = vsel %vm852, %v714, -1e+30
    %v861 = vsel %vm845, %v788, -1e+30
    %v862 = vsel %vm846, %v791, -1e+30
    %v863 = vsel %vm847, %v796, -1e+30
    %v864 = vsel %vm848, %v799, -1e+30
    %v865 = vsel %vm849, %v804, -1e+30
    %v866 = vsel %vm850, %v807, -1e+30
    %v867 = vsel %vm851, %v812, -1e+30
    %v868 = vsel %vm852, %v815, -1e+30
    %v869 = vsel %vm627, %v853, -inf
    %870 = vmax.xlane.f32.xlu0 %v869
    %v871 = vpop.xlane.xlu0 %870
    %v872 = vsel %vm627, %v854, -inf
    %873 = vmax.xlane.f32.xlu0 %v872
    %v874 = vpop.xlane.xlu0 %873
    %v875 = vsel %vm627, %v855, -inf
    %876 = vmax.xlane.f32.xlu0 %v875
    %v877 = vpop.xlane.xlu0 %876
    %v878 = vsel %vm627, %v856, -inf
    %879 = vmax.xlane.f32.xlu0 %v878
    %v880 = vpop.xlane.xlu0 %879
    %v881 = vsel %vm627, %v857, -inf
    %882 = vmax.xlane.f32.xlu0 %v881
    %v883 = vpop.xlane.xlu0 %882
    %v884 = vsel %vm627, %v858, -inf
    %885 = vmax.xlane.f32.xlu0 %v884
    %v886 = vpop.xlane.xlu0 %885
    %v887 = vsel %vm627, %v859, -inf
    %888 = vmax.xlane.f32.xlu0 %v887
    %v889 = vpop.xlane.xlu0 %888
    %v890 = vsel %vm627, %v860, -inf
    %891 = vmax.xlane.f32.xlu0 %v890
    %v892 = vpop.xlane.xlu0 %891
    %v893 = vsel %vm627, %v861, -inf
    %894 = vmax.xlane.f32.xlu0 %v893
    %v895 = vpop.xlane.xlu0 %894
    %v896 = vsel %vm627, %v862, -inf
    %897 = vmax.xlane.f32.xlu0 %v896
    %v898 = vpop.xlane.xlu0 %897
    %v899 = vsel %vm627, %v863, -inf
    %900 = vmax.xlane.f32.xlu0 %v899
    %v901 = vpop.xlane.xlu0 %900
    %v902 = vsel %vm627, %v864, -inf
    %903 = vmax.xlane.f32.xlu0 %v902
    %v904 = vpop.xlane.xlu0 %903
    %v905 = vsel %vm627, %v865, -inf
    %906 = vmax.xlane.f32.xlu0 %v905
    %v907 = vpop.xlane.xlu0 %906
    %v908 = vsel %vm627, %v866, -inf
    %909 = vmax.xlane.f32.xlu0 %v908
    %v910 = vpop.xlane.xlu0 %909
    %v911 = vsel %vm627, %v867, -inf
    %912 = vmax.xlane.f32.xlu0 %v911
    %v913 = vpop.xlane.xlu0 %912
    %v914 = vsel %vm627, %v868, -inf
    %915 = vmax.xlane.f32.xlu0 %v914
    %v916 = vpop.xlane.xlu0 %915
    %v917 = vsub.f32 %v853, %v871
    %v918 = vsub.f32 %v854, %v874
    %v919 = vsub.f32 %v855, %v877
    %v920 = vsub.f32 %v856, %v880
    %v921 = vsub.f32 %v857, %v883
    %v922 = vsub.f32 %v858, %v886
    %v923 = vsub.f32 %v859, %v889
    %v924 = vsub.f32 %v860, %v892
    %v925 = vsub.f32 %v861, %v895
    %v926 = vsub.f32 %v862, %v898
    %v927 = vsub.f32 %v863, %v901
    %v928 = vsub.f32 %v864, %v904
    %v929 = vsub.f32 %v865, %v907
    %v930 = vsub.f32 %v866, %v910
    %v931 = vsub.f32 %v867, %v913
    %v932 = vsub.f32 %v868, %v916
    %v933 = vmul.f32 %v917, 1.442695
    %v934 = vpow.pop %v933
    %v935 = vmul.f32 %v918, 1.442695
    %v936 = vpow.pop %v935
    %v937 = vmul.f32 %v919, 1.442695
    %v938 = vpow.pop %v937
    %v939 = vmul.f32 %v920, 1.442695
    %v940 = vpow.pop %v939
    %v941 = vmul.f32 %v921, 1.442695
    %v942 = vpow.pop %v941
    %v943 = vmul.f32 %v922, 1.442695
    %v944 = vpow.pop %v943
    %v945 = vmul.f32 %v923, 1.442695
    %v946 = vpow.pop %v945
    %v947 = vmul.f32 %v924, 1.442695
    %v948 = vpow.pop %v947
    %v949 = vmul.f32 %v925, 1.442695
    %v950 = vpow.pop %v949
    %v951 = vmul.f32 %v926, 1.442695
    %v952 = vpow.pop %v951
    %v953 = vmul.f32 %v927, 1.442695
    %v954 = vpow.pop %v953
    %v955 = vmul.f32 %v928, 1.442695
    %v956 = vpow.pop %v955
    %v957 = vmul.f32 %v929, 1.442695
    %v958 = vpow.pop %v957
    %v959 = vmul.f32 %v930, 1.442695
    %v960 = vpow.pop %v959
    %v961 = vmul.f32 %v931, 1.442695
    %v962 = vpow.pop %v961
    %v963 = vmul.f32 %v932, 1.442695
    %v964 = vpow.pop %v963
    %v965 = vsel %vm627, %v934, 0.0
    %966 = vadd.xlane.f32.xlu0 %v965
    %v967 = vpop.xlane.xlu0 %966
    %v968 = vsel %vm627, %v936, 0.0
    %969 = vadd.xlane.f32.xlu0 %v968
    %v970 = vpop.xlane.xlu0 %969
    %v971 = vsel %vm627, %v938, 0.0
    %972 = vadd.xlane.f32.xlu0 %v971
    %v973 = vpop.xlane.xlu0 %972
    %v974 = vsel %vm627, %v940, 0.0
    %975 = vadd.xlane.f32.xlu0 %v974
    %v976 = vpop.xlane.xlu0 %975
    %v977 = vsel %vm627, %v942, 0.0
    %978 = vadd.xlane.f32.xlu0 %v977
    %v979 = vpop.xlane.xlu0 %978
    %v980 = vsel %vm627, %v944, 0.0
    %981 = vadd.xlane.f32.xlu0 %v980
    %v982 = vpop.xlane.xlu0 %981
    %v983 = vsel %vm627, %v946, 0.0
    %984 = vadd.xlane.f32.xlu0 %v983
    %v985 = vpop.xlane.xlu0 %984
    %v986 = vsel %vm627, %v948, 0.0
    %987 = vadd.xlane.f32.xlu0 %v986
    %v988 = vpop.xlane.xlu0 %987
    %v989 = vsel %vm627, %v950, 0.0
    %990 = vadd.xlane.f32.xlu0 %v989
    %v991 = vpop.xlane.xlu0 %990
    %v992 = vsel %vm627, %v952, 0.0
    %993 = vadd.xlane.f32.xlu0 %v992
    %v994 = vpop.xlane.xlu0 %993
    %v995 = vsel %vm627, %v954, 0.0
    %996 = vadd.xlane.f32.xlu0 %v995
    %v997 = vpop.xlane.xlu0 %996
    %v998 = vsel %vm627, %v956, 0.0
    %999 = vadd.xlane.f32.xlu0 %v998
    %v1000 = vpop.xlane.xlu0 %999
    %v1001 = vsel %vm627, %v958, 0.0
    %1002 = vadd.xlane.f32.xlu0 %v1001
    %v1003 = vpop.xlane.xlu0 %1002
    %v1004 = vsel %vm627, %v960, 0.0
    %1005 = vadd.xlane.f32.xlu0 %v1004
    %v1006 = vpop.xlane.xlu0 %1005
    %v1007 = vsel %vm627, %v962, 0.0
    %1008 = vadd.xlane.f32.xlu0 %v1007
    %v1009 = vpop.xlane.xlu0 %1008
    %v1010 = vsel %vm627, %v964, 0.0
    %1011 = vadd.xlane.f32.xlu0 %v1010
    %v1012 = vpop.xlane.xlu0 %1011
    %v1013 = vrcp.pop %v967
    %v1014 = vrcp.pop %v970
    %v1015 = vrcp.pop %v973
    %v1016 = vrcp.pop %v976
    %v1017 = vrcp.pop %v979
    %v1018 = vrcp.pop %v982
    %v1019 = vrcp.pop %v985
    %v1020 = vrcp.pop %v988
    %v1021 = vrcp.pop %v991
    %v1022 = vrcp.pop %v994
    %v1023 = vrcp.pop %v997
    %v1024 = vrcp.pop %v1000
    %v1025 = vrcp.pop %v1003
    %v1026 = vrcp.pop %v1006
    %v1027 = vrcp.pop %v1009
    %v1028 = vrcp.pop %v1012
    %v1029 = vmul.f32 %v934, %v1013
    %v1030 = vmul.f32 %v936, %v1014
    %v1031 = vmul.f32 %v938, %v1015
    %v1032 = vmul.f32 %v940, %v1016
    %v1033 = vmul.f32 %v942, %v1017
    %v1034 = vmul.f32 %v944, %v1018
    %v1035 = vmul.f32 %v946, %v1019
    %v1036 = vmul.f32 %v948, %v1020
    %v1037 = vmul.f32 %v950, %v1021
    %v1038 = vmul.f32 %v952, %v1022
    %v1039 = vmul.f32 %v954, %v1023
    %v1040 = vmul.f32 %v956, %v1024
    %v1041 = vmul.f32 %v958, %v1025
    %v1042 = vmul.f32 %v960, %v1026
    %v1043 = vmul.f32 %v962, %v1027
    %v1044 = vmul.f32 %v964, %v1028
    %v1045 = vpack.c.bf16 %v1030, %v1029
    %v1046 = vpack.c.bf16 %v1032, %v1031
    %v1047 = vpack.c.bf16 %v1034, %v1033
    %v1048 = vpack.c.bf16 %v1036, %v1035
    %v1049 = vpack.c.bf16 %v1038, %v1037
    %v1050 = vpack.c.bf16 %v1040, %v1039
    %v1051 = vpack.c.bf16 %v1042, %v1041
    %v1052 = vpack.c.bf16 %v1044, %v1043
    %v1054 = vsel %vm627, %v1045, 0
    %v1057 = vsel %vm627, %v1046, 0
    %v1060 = vsel %vm627, %v1047, 0
    %v1063 = vsel %vm627, %v1048, 0
    %1065 = vmatprep.subr.bf16.mxu0 0
    %1066 = vmatpush1.bf16.msra.mxu0 %v607
    %1067 = vmatprep.subr.bf16.mxu0 0
    %1068 = vmatpush1.bf16.msra.mxu0 %v608
    %1069 = vmatprep.subr.bf16.mxu0 0
    %1070 = vmatpush1.bf16.msra.mxu0 %v609
    %1071 = vmatprep.subr.bf16.mxu0 0
    %1072 = vmatpush1.bf16.msra.mxu0 %v610
    %1073 = vmatprep.subr.bf16.mxu0 0
    %1074 = vmatpush1.bf16.msra.mxu0 0
    %1075 = vmatprep.subr.bf16.mxu0 0
    %1076 = vmatpush1.bf16.msra.mxu0 0
    %1077 = vmatprep.subr.bf16.mxu0 0
    %1078 = vmatpush1.bf16.msra.mxu0 0
    %1079 = vmatprep.subr.bf16.mxu0 0
    %1080 = vmatpush1.bf16.msra.mxu0 0
    %1081 = vmatprep.subr.bf16.mxu0 0
    %1082 = vmatpush1.bf16.msra.mxu0 0
    %1083 = vmatprep.subr.bf16.mxu0 0
    %1084 = vmatpush1.bf16.msra.mxu0 0
    %1085 = vmatprep.subr.bf16.mxu0 0
    %1086 = vmatpush1.bf16.msra.mxu0 0
    %1087 = vmatprep.subr.bf16.mxu0 0
    %1088 = vmatpush1.bf16.msra.mxu0 0
    %1089 = vmatprep.subr.bf16.mxu0 0
    %1090 = vmatpush1.bf16.msra.mxu0 0
    %1091 = vmatprep.subr.bf16.mxu0 0
    %1092 = vmatpush1.bf16.msra.mxu0 0
    %1093 = vmatprep.subr.bf16.mxu0 0
    %1094 = vmatpush1.bf16.msra.mxu0 0
    %1095 = vmatprep.subr.bf16.mxu0 0
    %1096 = vmatpush1.bf16.msra.mxu0 0
    %1097 = vmatprep.mubr.bf16.mxu0 0
    %1098 = vmatmul.mubr.bf16.gmra.mrb[0].mxu0 %v1054
    %v1099 = vpop.f32.mrb[0].mxu0
    %v1100 = vadd.f32 0.0, %v1099
    %v1101 = vpop.f32.mrb[0].mxu0
    %v1102 = vpop.f32.mrb[0].mxu0
    %v1103 = vadd.f32 0.0, %v1102
    %v1104 = vpop.f32.mrb[0].mxu0
    %1105 = vmatprep.mubr.bf16.mxu0 0
    %1106 = vmatmul.mubr.bf16.gmra.mrb[0].mxu0 %v1057
    %v1107 = vpop.f32.mrb[0].mxu0
    %v1108 = vadd.f32 0.0, %v1107
    %v1109 = vpop.f32.mrb[0].mxu0
    %v1110 = vpop.f32.mrb[0].mxu0
    %v1111 = vadd.f32 0.0, %v1110
    %v1112 = vpop.f32.mrb[0].mxu0
    %1113 = vmatprep.mubr.bf16.mxu0 0
    %1114 = vmatmul.mubr.bf16.gmra.mrb[0].mxu0 %v1060
    %v1115 = vpop.f32.mrb[0].mxu0
    %v1116 = vadd.f32 0.0, %v1115
    %v1117 = vpop.f32.mrb[0].mxu0
    %v1118 = vpop.f32.mrb[0].mxu0
    %v1119 = vadd.f32 0.0, %v1118
    %v1120 = vpop.f32.mrb[0].mxu0
    %1121 = vmatprep.mubr.bf16.mxu0 0
    %1122 = vmatmul.mubr.bf16.gmra.mrb[0].mxu0 %v1063
    %v1123 = vpop.f32.mrb[0].mxu0
    %v1124 = vadd.f32 0.0, %v1123
    %v1125 = vpop.f32.mrb[0].mxu0
    %v1126 = vpop.f32.mrb[0].mxu0
    %v1127 = vadd.f32 0.0, %v1126
    %v1128 = vpop.f32.mrb[0].mxu0
    %1129 = vdwg.mxu0
    %v1131 = vsel %vm627, %v1049, 0
    %v1134 = vsel %vm627, %v1050, 0
    %v1137 = vsel %vm627, %v1051, 0
    %v1140 = vsel %vm627, %v1052, 0
    %1142 = vmatprep.subr.bf16.mxu0 0
    %1143 = vmatpush1.bf16.msra.mxu0 %v611
    %1144 = vmatprep.subr.bf16.mxu0 0
    %1145 = vmatpush1.bf16.msra.mxu0 %v612
    %1146 = vmatprep.subr.bf16.mxu0 0
    %1147 = vmatpush1.bf16.msra.mxu0 %v613
    %1148 = vmatprep.subr.bf16.mxu0 0
    %1149 = vmatpush1.bf16.msra.mxu0 %v614
    %1150 = vmatprep.subr.bf16.mxu0 0
    %1151 = vmatpush1.bf16.msra.mxu0 0
    %1152 = vmatprep.subr.bf16.mxu0 0
    %1153 = vmatpush1.bf16.msra.mxu0 0
    %1154 = vmatprep.subr.bf16.mxu0 0
    %1155 = vmatpush1.bf16.msra.mxu0 0
    %1156 = vmatprep.subr.bf16.mxu0 0
    %1157 = vmatpush1.bf16.msra.mxu0 0
    %1158 = vmatprep.subr.bf16.mxu0 0
    %1159 = vmatpush1.bf16.msra.mxu0 0
    %1160 = vmatprep.subr.bf16.mxu0 0
    %1161 = vmatpush1.bf16.msra.mxu0 0
    %1162 = vmatprep.subr.bf16.mxu0 0
    %1163 = vmatpush1.bf16.msra.mxu0 0
    %1164 = vmatprep.subr.bf16.mxu0 0
    %1165 = vmatpush1.bf16.msra.mxu0 0
    %1166 = vmatprep.subr.bf16.mxu0 0
    %1167 = vmatpush1.bf16.msra.mxu0 0
    %1168 = vmatprep.subr.bf16.mxu0 0
    %1169 = vmatpush1.bf16.msra.mxu0 0
    %1170 = vmatprep.subr.bf16.mxu0 0
    %1171 = vmatpush1.bf16.msra.mxu0 0
    %1172 = vmatprep.subr.bf16.mxu0 0
    %1173 = vmatpush1.bf16.msra.mxu0 0
    %1174 = vmatprep.mubr.bf16.mxu0 0
    %1175 = vmatmul.mubr.bf16.gmra.mrb[0].mxu0 %v1131
    %v1176 = vpop.f32.mrb[0].mxu0
    %v1177 = vadd.f32 0.0, %v1176
    %v1178 = vpop.f32.mrb[0].mxu0
    %v1179 = vpop.f32.mrb[0].mxu0
    %v1180 = vadd.f32 0.0, %v1179
    %v1181 = vpop.f32.mrb[0].mxu0
    %1182 = vmatprep.mubr.bf16.mxu0 0
    %1183 = vmatmul.mubr.bf16.gmra.mrb[0].mxu0 %v1134
    %v1184 = vpop.f32.mrb[0].mxu0
    %v1185 = vadd.f32 0.0, %v1184
    %v1186 = vpop.f32.mrb[0].mxu0
    %v1187 = vpop.f32.mrb[0].mxu0
    %v1188 = vadd.f32 0.0, %v1187
    %v1189 = vpop.f32.mrb[0].mxu0
    %1190 = vmatprep.mubr.bf16.mxu0 0
    %1191 = vmatmul.mubr.bf16.gmra.mrb[0].mxu0 %v1137
    %v1192 = vpop.f32.mrb[0].mxu0
    %v1193 = vadd.f32 0.0, %v1192
    %v1194 = vpop.f32.mrb[0].mxu0
    %v1195 = vpop.f32.mrb[0].mxu0
    %v1196 = vadd.f32 0.0, %v1195
    %v1197 = vpop.f32.mrb[0].mxu0
    %1198 = vmatprep.mubr.bf16.mxu0 0
    %1199 = vmatmul.mubr.bf16.gmra.mrb[0].mxu0 %v1140
    %v1200 = vpop.f32.mrb[0].mxu0
    %v1201 = vadd.f32 0.0, %v1200
    %v1202 = vpop.f32.mrb[0].mxu0
    %v1203 = vpop.f32.mrb[0].mxu0
    %v1204 = vadd.f32 0.0, %v1203
    %v1205 = vpop.f32.mrb[0].mxu0
    %1206 = vdwg.mxu0
    %1207 = vst.msk [vmem:[#allocation2] sm:$0xff] %vm627, %v1100
    %1208 = vst.msk [vmem:[#allocation2 + $0x8] sm:$0xff] %vm627, %v1103
    %1209 = vst.msk [vmem:[#allocation2 + $0x10] sm:$0xff] %vm627, %v1108
    %1210 = vst.msk [vmem:[#allocation2 + $0x18] sm:$0xff] %vm627, %v1111
    %1211 = vst.msk [vmem:[#allocation2 + $0x20] sm:$0xff] %vm627, %v1116
    %1212 = vst.msk [vmem:[#allocation2 + $0x28] sm:$0xff] %vm627, %v1119
    %1213 = vst.msk [vmem:[#allocation2 + $0x30] sm:$0xff] %vm627, %v1124
    %1214 = vst.msk [vmem:[#allocation2 + $0x38] sm:$0xff] %vm627, %v1127
    %1215 = vst.msk [vmem:[#allocation2 + $0x40] sm:$0xff] %vm627, %v1177
    %1216 = vst.msk [vmem:[#allocation2 + $0x48] sm:$0xff] %vm627, %v1180
    %1217 = vst.msk [vmem:[#allocation2 + $0x50] sm:$0xff] %vm627, %v1185
    %1218 = vst.msk [vmem:[#allocation2 + $0x58] sm:$0xff] %vm627, %v1188
    %1219 = vst.msk [vmem:[#allocation2 + $0x60] sm:$0xff] %vm627, %v1193
    %1220 = vst.msk [vmem:[#allocation2 + $0x68] sm:$0xff] %vm627, %v1196
    %1221 = vst.msk [vmem:[#allocation2 + $0x70] sm:$0xff] %vm627, %v1201
    %1222 = vst.msk [vmem:[#allocation2 + $0x78] sm:$0xff] %vm627, %v1204
    // Predicated region
    $region10: #{tpu_custom_call.1} parent=1 // pred_check
      _
    $region11: #{tpu_custom_call.1} parent=1 // pred_check_branch
      %1224 = sbr.rel (0) target = $region13
    $region12: #{tpu_custom_call.1} parent=1 // pred_region
      %s1226 = ssub.s32 2048, 2048
      %1227 = vsyncadd [#allocation3], %s1226
      %s1228 = sshll.u32 [#allocation2], 4
      %s1229 = int_to_ptr.vmem [resolvable:$true] %s1228
      %1234 = dma.vmem_to_hbm [thread:$0]  %s1229, 2048, %s2, [#allocation3], 128, 128, 8
    $region13: #{tpu_custom_call.1} parent=1 // pred_fallthru
      _
    // Predicated region
    $region14: #{tpu_custom_call.1} parent=1 // pred_check
      _
    $region15: #{tpu_custom_call.1} parent=1 // pred_check_branch
      %1236 = sbr.rel (0) target = $region17
    $region16: #{tpu_custom_call.1} parent=1 // pred_region
      %1237 = dma.done [#allocation3], 2048
    $region17: #{tpu_custom_call.1} parent=1 // pred_fallthru
      _
    %1238 = vsyncpa [#allocation3], 1

</llo_original>
